<compile_context>
chip_gen: v7x
topology: tpu7x:2x2x1
jax: 0.10.0
libtpu: 0.0.40
codegen_flags: <defaults>
</compile_context>

<pallas_src>
import functools

import jax
import jax.numpy as jnp
from jax import lax
from jax.experimental import pallas as pl
from jax.experimental.pallas import tpu as pltpu

block_size = 8   # T
n_embed = 32     # C
head_size = 16   # H


def head_kernel(x_ref, w_ref, o_ref, *, batch, seq):
    # x_ref: (B*T, C) flattened; w_ref: (C, 3H) fused [q*scale | k | v];
    # o_ref: (B*T, H)
    BT, C = x_ref.shape
    H = o_ref.shape[-1]
    B, T = batch, seq

    x = x_ref[...]                                    # (BT, C)

    # Single fused QKV projection: one MXU push, M = B*T, N = 3H.
    qkv = jnp.dot(x, w_ref[...], preferred_element_type=jnp.float32)  # (BT, 3H)

    q = qkv[:, 0 * H:1 * H]                           # scale pre-folded into w
    k = qkv[:, 1 * H:2 * H]
    v = qkv[:, 2 * H:3 * H]

    # Scores for the whole flattened batch: (BT, BT), contraction on H.
    s = lax.dot_general(
        q, k,
        dimension_numbers=(((1,), (1,)), ((), ())),
        preferred_element_type=jnp.float32,
    )

    # Combined block-diagonal + causal mask from a single 2-D iota pair.
    # Row r = b*T + t may attend to cols c in [b*T, b*T + t].
    row = lax.broadcasted_iota(jnp.int32, (BT, BT), 0)
    col = lax.broadcasted_iota(jnp.int32, (BT, BT), 1)
    # Per-row block start (T * (row // T)) via compares only — B is static,
    # so this unrolls to B-1 cheap VPU ops and avoids vector integer division.
    row_start = jnp.zeros((BT, BT), jnp.int32)
    for b in range(1, B):
        row_start = row_start + (row >= b * T).astype(jnp.int32) * T
    valid = (col >= row_start) & (col <= row)
    s = jnp.where(valid, s, jnp.float32(-1e30))       # finite, robust mask

    # Softmax along the last axis (f32; reciprocal goes to the EUP slot).
    s = s - jnp.max(s, axis=-1, keepdims=True)
    e = jnp.exp(s)
    p = e * pl.reciprocal(jnp.sum(e, axis=-1, keepdims=True), approx=True)

    # out = p @ v : (BT, H); invalid (cross-batch) columns have p == 0.
    o_ref[...] = jnp.dot(p, v, preferred_element_type=jnp.float32)


def make_qkv_weight(wq, wk, wv, n_embed_dim):
    """Parameter-init-time fusion: concat [q | k | v] and fold the softmax
    scale C**-0.5 (PyTorch module uses C = n_embed) into the q columns."""
    scale = float(n_embed_dim) ** -0.5
    return jnp.concatenate([wq * scale, wk, wv], axis=1)   # (C, 3H)


def head_forward(x, w_qkv):
    """x: (B, T, C) f32; w_qkv: (C, 3H) f32 (pre-fused, scale folded) ->
    (B, T, H) f32."""
    B, T, C = x.shape
    H = w_qkv.shape[1] // 3

    # Free reshape of contiguous dims: flatten batch into MXU sublanes.
    x2d = x.reshape(B * T, C)

    out2d = pl.pallas_call(
        functools.partial(head_kernel, batch=B, seq=T),
        out_shape=jax.ShapeDtypeStruct((B * T, H), jnp.float32),
        grid_spec=pltpu.PrefetchScalarGridSpec(
            num_scalar_prefetch=0,
            grid=(1,),                                # whole problem, one step
            in_specs=[
                pl.BlockSpec((B * T, C), lambda i: (0, 0)),
                pl.BlockSpec((C, 3 * H), lambda i: (0, 0)),
            ],
            out_specs=pl.BlockSpec((B * T, H), lambda i: (0, 0)),
        ),
        compiler_params=pltpu.CompilerParams(
            dimension_semantics=("arbitrary",)),
    )(x2d, w_qkv)

    return out2d.reshape(B, T, H)                     # free reshape back


def reference_forward(x, wk, wq, wv):
    B, T, C = x.shape
    k = x @ wk
    q = x @ wq
    v = x @ wv
    w = jnp.einsum("bth,bsh->bts", q, k) * (float(C) ** -0.5)
    tril = jnp.tril(jnp.ones((T, T), dtype=bool))
    w = jnp.where(tril, w, -jnp.inf)
    w = jax.nn.softmax(w, axis=-1)
    return w @ v


if __name__ == "__main__":
    key = jax.random.PRNGKey(0)
    kx, kk, kq, kv = jax.random.split(key, 4)

    B, T, C, H = 2, block_size, n_embed, head_size
    x = jax.random.normal(kx, (B, T, C), dtype=jnp.float32)

    # deterministic "nn.Linear" weights, stored as (in, out) = (C, H)
    bound = 1.0 / (C ** 0.5)
    wk = jax.random.uniform(kk, (C, H), jnp.float32, -bound, bound)
    wq = jax.random.uniform(kq, (C, H), jnp.float32, -bound, bound)
    wv = jax.random.uniform(kv, (C, H), jnp.float32, -bound, bound)

    # Done once at parameter-init time, outside the hot path.
    w_qkv = make_qkv_weight(wq, wk, wv, C)

    out = jax.jit(head_forward)(x, w_qkv)
    out = jax.block_until_ready(out)

    ref = reference_forward(x, wk, wq, wv)
    assert out.shape == (B, T, H)
    # Tolerance slightly relaxed because the softmax denominator uses the
    # EUP approximate reciprocal (pl.reciprocal(..., approx=True)).
    assert jnp.allclose(out, ref, atol=2e-3, rtol=2e-3), "mismatch vs reference"

    print("KERNEL_OK")
</pallas_src>

<mosaic_0001>
module attributes {stable_mosaic.version = 11 : i64} {
  func.func @head_kernel(%arg0: i32, %arg1: memref<16x32xf32, #tpu.memory_space<vmem>>, %arg2: memref<32x48xf32, #tpu.memory_space<vmem>>, %arg3: memref<16x16xf32, #tpu.memory_space<vmem>>) attributes {dimension_semantics = [#tpu.dimension_semantics<arbitrary>], iteration_bounds = array<i64: 1>, scalar_prefetch = 0 : i64, scratch_operands = 0 : i64, tpu.core_type = #tpu.core_type<tc>, window_params = [{pipeline_mode = #tpu.pipeline_mode<synchronous>, transform_indices = @transform_0, window_bounds = array<i64: 16, 32>}, {pipeline_mode = #tpu.pipeline_mode<synchronous>, transform_indices = @transform_1, window_bounds = array<i64: 32, 48>}, {pipeline_mode = #tpu.pipeline_mode<synchronous>, transform_indices = @transform_2, window_bounds = array<i64: 16, 16>}]} {
    %c0 = arith.constant 0 : index
    %c0_0 = arith.constant 0 : index
    %0 = vector.load %arg1[%c0, %c0_0] : memref<16x32xf32, #tpu.memory_space<vmem>>, vector<16x32xf32>
    %c0_1 = arith.constant 0 : index
    %c0_2 = arith.constant 0 : index
    %1 = vector.load %arg2[%c0_1, %c0_2] : memref<32x48xf32, #tpu.memory_space<vmem>>, vector<32x48xf32>
    %cst = arith.constant dense<0.000000e+00> : vector<16x48xf32>
    %2 = tpu.matmul %0, %1, %cst {dimension_numbers = #tpu.dot_dimension_numbers<[1], [0], [0], [1], [0, 0, 1, 1], [], []>} : vector<16x32xf32>, vector<32x48xf32>, vector<16x48xf32> -> vector<16x48xf32>
    %3 = vector.extract_strided_slice %2 {offsets = [0, 0], sizes = [16, 16], strides = [1, 1]} : vector<16x48xf32> to vector<16x16xf32>
    %4 = vector.extract_strided_slice %2 {offsets = [0, 16], sizes = [16, 16], strides = [1, 1]} : vector<16x48xf32> to vector<16x16xf32>
    %5 = vector.extract_strided_slice %2 {offsets = [0, 32], sizes = [16, 16], strides = [1, 1]} : vector<16x48xf32> to vector<16x16xf32>
    %cst_3 = arith.constant dense<0.000000e+00> : vector<16x16xf32>
    %6 = tpu.matmul %3, %4, %cst_3 {dimension_numbers = #tpu.dot_dimension_numbers<[1], [1], [0], [0], [0, 0, 1, 0], [], []>} : vector<16x16xf32>, vector<16x16xf32>, vector<16x16xf32> -> vector<16x16xf32>
    %7 = tpu.iota {dimensions = array<i32: 0>} : vector<16x16xi32>
    %8 = tpu.iota {dimensions = array<i32: 1>} : vector<16x16xi32>
    %c0_i32 = arith.constant 0 : i32
    %9 = vector.broadcast %c0_i32 : i32 to vector<16x16xi32>
    %c8_i32 = arith.constant 8 : i32
    %10 = vector.broadcast %c8_i32 : i32 to vector<16x16xi32>
    %11 = arith.cmpi sge, %7, %10 : vector<16x16xi32>
    %12 = arith.extui %11 : vector<16x16xi1> to vector<16x16xi32>
    %c8_i32_4 = arith.constant 8 : i32
    %13 = vector.broadcast %c8_i32_4 : i32 to vector<16x16xi32>
    %14 = arith.muli %12, %13 : vector<16x16xi32>
    %15 = arith.addi %9, %14 : vector<16x16xi32>
    %16 = arith.cmpi sge, %8, %15 : vector<16x16xi32>
    %17 = arith.cmpi sle, %8, %7 : vector<16x16xi32>
    %18 = arith.andi %16, %17 : vector<16x16xi1>
    %cst_5 = arith.constant -1.000000e+30 : f32
    %19 = vector.broadcast %cst_5 : f32 to vector<16x16xf32>
    %20 = arith.select %18, %6, %19 : vector<16x16xi1>, vector<16x16xf32>
    %cst_6 = arith.constant dense<0xFF800000> : vector<16xf32>
    %21 = vector.multi_reduction <maximumf>, %20, %cst_6 [1] : vector<16x16xf32> to vector<16xf32>
    %22 = vector.shape_cast %21 : vector<16xf32> to vector<16x1xf32>
    %23 = vector.broadcast %22 : vector<16x1xf32> to vector<16x16xf32>
    %24 = arith.subf %20, %23 : vector<16x16xf32>
    %25 = math.exp %24 : vector<16x16xf32>
    %cst_7 = arith.constant dense<0.000000e+00> : vector<16xf32>
    %26 = vector.multi_reduction <add>, %25, %cst_7 [1] : vector<16x16xf32> to vector<16xf32>
    %27 = vector.shape_cast %26 : vector<16xf32> to vector<16x1xf32>
    %28 = tpu.reciprocal %27 {approx = true} : vector<16x1xf32> -> vector<16x1xf32>
    %29 = vector.broadcast %28 : vector<16x1xf32> to vector<16x16xf32>
    %30 = arith.mulf %25, %29 : vector<16x16xf32>
    %cst_8 = arith.constant dense<0.000000e+00> : vector<16x16xf32>
    %31 = tpu.matmul %30, %5, %cst_8 {dimension_numbers = #tpu.dot_dimension_numbers<[1], [0], [0], [1], [0, 0, 1, 1], [], []>} : vector<16x16xf32>, vector<16x16xf32>, vector<16x16xf32> -> vector<16x16xf32>
    %c0_9 = arith.constant 0 : index
    %c0_10 = arith.constant 0 : index
    %32 = vector.load %arg3[%c0_9, %c0_10] : memref<16x16xf32, #tpu.memory_space<vmem>>, vector<16x16xf32>
    tpu.vector_store %arg3[%c0_9, %c0_10], %31 {strides = array<i32>} : memref<16x16xf32, #tpu.memory_space<vmem>>, vector<16x16xf32>,
    return
  }
  func.func @transform_0(%arg0: i32) -> (i32, i32) {
    %c0_i32 = arith.constant 0 : i32
    %c0_i32_0 = arith.constant 0 : i32
    %c0_i32_1 = arith.constant 0 : i32
    return %c0_i32, %c0_i32_0 : i32, i32
  }
  func.func @transform_1(%arg0: i32) -> (i32, i32) {
    %c0_i32 = arith.constant 0 : i32
    %c0_i32_0 = arith.constant 0 : i32
    %c0_i32_1 = arith.constant 0 : i32
    return %c0_i32, %c0_i32_0 : i32, i32
  }
  func.func @transform_2(%arg0: i32) -> (i32, i32) {
    %c0_i32 = arith.constant 0 : i32
    %c0_i32_0 = arith.constant 0 : i32
    %c0_i32_1 = arith.constant 0 : i32
    return %c0_i32, %c0_i32_0 : i32, i32
  }
}

</mosaic_0001>

<llo_original>
// kernel: head_forward.1
$region0: #{head_forward.1}
  #allocation0 [shape = 'u32[]', space=smem, size = 0x4, offset = 0x4, fixed_abs, tag = 'smem constant byte address 0x4 - core index']
  #allocation1 [shape = 'u32[144,128]{1,0:T(1,128)}', space=vmem, size = 0x12000, scoped, tag = 'internal scratch']
  %s0 = inlined_call_operand.hbm [shape: f32[16,32], index: 0, kind: input, shape index: {}]
  %s1 = inlined_call_operand.hbm [shape: f32[32,48], index: 1, kind: input, shape index: {}]
  %s2 = inlined_call_operand.hbm [shape: f32[16,16], index: 2, kind: output, shape index: {}]
  %s3 = sld [smem:[#allocation0]]
  $region26: #{head_forward.1} parent=0
    _
  %s5 = ssub.s32 1, %s3
  %s6 = scalar_select 0, %s5, %s3
  $region1: #{head_forward.1} parent=0
    #allocation2 [shape = 'u8[8192]{0}', space=vmem, size = 0x2000, scoped, tag = 'input window, operand 0, single buffered']
    #allocation3 [shape = 's32[1]{0}', space=sflag, size = 0x4, scoped, tag = 'scoped memory for head_forward.1']
    #allocation4 [shape = 's32[1]{0}', space=sflag, size = 0x4, scoped, tag = 'scoped memory for head_forward.1']
    #allocation5 [shape = 'u8[16384]{0}', space=vmem, size = 0x4000, scoped, tag = 'input window, operand 1, single buffered']
    #allocation6 [shape = 's32[1]{0}', space=sflag, size = 0x4, scoped, tag = 'scoped memory for head_forward.1']
    #allocation7 [shape = 'u8[8192]{0}', space=vmem, size = 0x2000, scoped, tag = 'output window, operand 0, single buffered']
    %7 = vsyncpa [#allocation3], 0
    %8 = vsyncpa [#allocation6], 0
    %9 = vsyncpa [#allocation4], 0
    // Predicated region
    $region2: #{head_forward.1} parent=1 // pred_check
      _
    $region3: #{head_forward.1} parent=1 // pred_check_branch
      %11 = sbr.rel (0) target = $region5
    $region4: #{head_forward.1} parent=1 // pred_region
      %s13 = ssub.s32 256, 256
      %14 = vsyncadd [#allocation3], %s13
      %s15 = sshll.u32 [#allocation2], 4
      %s16 = int_to_ptr.vmem [resolvable:$true] %s15
      %21 = dma.hbm_to_vmem [thread:$0]  %s0, 256, %s16, [#allocation3], 128, 128, 8
    $region5: #{head_forward.1} parent=1 // pred_fallthru
      _
    // Predicated region
    $region6: #{head_forward.1} parent=1 // pred_check
      _
    $region7: #{head_forward.1} parent=1 // pred_check_branch
      %23 = sbr.rel (0) target = $region9
    $region8: #{head_forward.1} parent=1 // pred_region
      %s25 = ssub.s32 512, 512
      %26 = vsyncadd [#allocation6], %s25
      %s27 = sshll.u32 [#allocation5], 4
      %s28 = int_to_ptr.vmem [resolvable:$true] %s27
      %33 = dma.hbm_to_vmem [thread:$0]  %s1, 512, %s28, [#allocation6], 128, 128, 8
    $region9: #{head_forward.1} parent=1 // pred_fallthru
      _
    // Predicated region
    $region10: #{head_forward.1} parent=1 // pred_check
      _
    $region11: #{head_forward.1} parent=1 // pred_check_branch
      %35 = sbr.rel (0) target = $region13
    $region12: #{head_forward.1} parent=1 // pred_region
      %36 = dma.done [#allocation3], 256
    $region13: #{head_forward.1} parent=1 // pred_fallthru
      _
    // Predicated region
    $region14: #{head_forward.1} parent=1 // pred_check
      _
    $region15: #{head_forward.1} parent=1 // pred_check_branch
      %38 = sbr.rel (0) target = $region17
    $region16: #{head_forward.1} parent=1 // pred_region
      %39 = dma.done [#allocation6], 512
    $region17: #{head_forward.1} parent=1 // pred_fallthru
      _
    %v40 = vld [vmem:[#allocation2] sm:$0xff]
    %v41 = vld [vmem:[#allocation2 + $0x8] sm:$0xff]
    %v42 = vld [vmem:[#allocation5] sm:$0xff]
    %v43 = vld [vmem:[#allocation5 + $0x8] sm:$0xff]
    %v44 = vld [vmem:[#allocation5 + $0x10] sm:$0xff]
    %v45 = vld [vmem:[#allocation5 + $0x18] sm:$0xff]
    %vm46 = vcmask 261120
    %v48 = vsel %vm46, %v40, 0
    %v51 = vsel %vm46, %v41, 0
    %53 = vmatprep.subr.mxu0 0.0
    %54 = vmatpush1.msra.mxu0 %v42
    %55 = vmatprep.subr.mxu0 0.0
    %56 = vmatpush1.msra.mxu0 %v43
    %57 = vmatprep.subr.mxu0 0.0
    %58 = vmatpush1.msra.mxu0 %v44
    %59 = vmatprep.subr.mxu0 0.0
    %60 = vmatpush1.msra.mxu0 %v45
    %61 = vmatprep.subr.mxu0 0.0
    %62 = vmatpush1.msra.mxu0 0.0
    %63 = vmatprep.subr.mxu0 0.0
    %64 = vmatpush1.msra.mxu0 0.0
    %65 = vmatprep.subr.mxu0 0.0
    %66 = vmatpush1.msra.mxu0 0.0
    %67 = vmatprep.subr.mxu0 0.0
    %68 = vmatpush1.msra.mxu0 0.0
    %69 = vmatprep.subr.mxu0 0.0
    %70 = vmatpush1.msra.mxu0 0.0
    %71 = vmatprep.subr.mxu0 0.0
    %72 = vmatpush1.msra.mxu0 0.0
    %73 = vmatprep.subr.mxu0 0.0
    %74 = vmatpush1.msra.mxu0 0.0
    %75 = vmatprep.subr.mxu0 0.0
    %76 = vmatpush1.msra.mxu0 0.0
    %77 = vmatprep.subr.mxu0 0.0
    %78 = vmatpush1.msra.mxu0 0.0
    %79 = vmatprep.subr.mxu0 0.0
    %80 = vmatpush1.msra.mxu0 0.0
    %81 = vmatprep.subr.mxu0 0.0
    %82 = vmatpush1.msra.mxu0 0.0
    %83 = vmatprep.subr.mxu0 0.0
    %84 = vmatpush1.msra.mxu0 0.0
    %85 = vmatprep.subr.mxu0 0.0
    %86 = vmatpush1.msra.mxu0 0.0
    %87 = vmatprep.subr.mxu0 0.0
    %88 = vmatpush1.msra.mxu0 0.0
    %89 = vmatprep.subr.mxu0 0.0
    %90 = vmatpush1.msra.mxu0 0.0
    %91 = vmatprep.subr.mxu0 0.0
    %92 = vmatpush1.msra.mxu0 0.0
    %93 = vmatprep.subr.mxu0 0.0
    %94 = vmatpush1.msra.mxu0 0.0
    %95 = vmatprep.subr.mxu0 0.0
    %96 = vmatpush1.msra.mxu0 0.0
    %97 = vmatprep.subr.mxu0 0.0
    %98 = vmatpush1.msra.mxu0 0.0
    %99 = vmatprep.subr.mxu0 0.0
    %100 = vmatpush1.msra.mxu0 0.0
    %101 = vmatprep.subr.mxu0 0.0
    %102 = vmatpush1.msra.mxu0 0.0
    %103 = vmatprep.subr.mxu0 0.0
    %104 = vmatpush1.msra.mxu0 0.0
    %105 = vmatprep.subr.mxu0 0.0
    %106 = vmatpush1.msra.mxu0 0.0
    %107 = vmatprep.subr.mxu0 0.0
    %108 = vmatpush1.msra.mxu0 0.0
    %109 = vmatprep.subr.mxu0 0.0
    %110 = vmatpush1.msra.mxu0 0.0
    %111 = vmatprep.subr.mxu0 0.0
    %112 = vmatpush1.msra.mxu0 0.0
    %113 = vmatprep.subr.mxu0 0.0
    %114 = vmatpush1.msra.mxu0 0.0
    %115 = vmatprep.subr.mxu0 0.0
    %116 = vmatpush1.msra.mxu0 0.0
    %117 = vmatprep.mubr.f32.mxu0 0.0
    %118 = vmatmul.mubr.f32.gmra.mrb[0].mxu0 %v48
    %v119 = vpop.f32.mrb[0].mxu0
    %v120 = vadd.f32 0.0, %v119
    %v121 = vpop.f32.mrb[0].mxu0
    %122 = vmatprep.mubr.f32.mxu0 0.0
    %123 = vmatmul.mubr.f32.gmra.mrb[0].mxu0 %v51
    %v124 = vpop.f32.mrb[0].mxu0
    %v125 = vadd.f32 0.0, %v124
    %v126 = vpop.f32.mrb[0].mxu0
    %127 = vdwg.mxu0
    %130 = vrot.lane.b32.xlu0 %v120, 112
    %v131 = vpop.permute.xlu0 %130
    %132 = vrot.lane.b32.xlu0 %v125, 112
    %v133 = vpop.permute.xlu0 %132
    %vm134 = vcmask 130048
    %v135 = vsel %vm134, %v120, 0
    %v137 = vsel %vm134, %v125, 0
    %v139 = vsel %vm134, %v131, 0
    %v141 = vsel %vm134, %v133, 0
    %143 = vmatprep.subr.mxu0 0.0
    %144 = vmatpush1.xpose.msra.mxu0 %v139
    %145 = vmatprep.subr.mxu0 0.0
    %146 = vmatpush1.xpose.msra.mxu0 %v141
    %147 = vmatprep.subr.mxu0 0.0
    %148 = vmatpush1.xpose.msra.mxu0 0.0
    %149 = vmatprep.subr.mxu0 0.0
    %150 = vmatpush1.xpose.msra.mxu0 0.0
    %151 = vmatprep.subr.mxu0 0.0
    %152 = vmatpush1.xpose.msra.mxu0 0.0
    %153 = vmatprep.subr.mxu0 0.0
    %154 = vmatpush1.xpose.msra.mxu0 0.0
    %155 = vmatprep.subr.mxu0 0.0
    %156 = vmatpush1.xpose.msra.mxu0 0.0
    %157 = vmatprep.subr.mxu0 0.0
    %158 = vmatpush1.xpose.msra.mxu0 0.0
    %159 = vmatprep.subr.mxu0 0.0
    %160 = vmatpush1.xpose.msra.mxu0 0.0
    %161 = vmatprep.subr.mxu0 0.0
    %162 = vmatpush1.xpose.msra.mxu0 0.0
    %163 = vmatprep.subr.mxu0 0.0
    %164 = vmatpush1.xpose.msra.mxu0 0.0
    %165 = vmatprep.subr.mxu0 0.0
    %166 = vmatpush1.xpose.msra.mxu0 0.0
    %167 = vmatprep.subr.mxu0 0.0
    %168 = vmatpush1.xpose.msra.mxu0 0.0
    %169 = vmatprep.subr.mxu0 0.0
    %170 = vmatpush1.xpose.msra.mxu0 0.0
    %171 = vmatprep.subr.mxu0 0.0
    %172 = vmatpush1.xpose.msra.mxu0 0.0
    %173 = vmatprep.subr.mxu0 0.0
    %174 = vmatpush1.xpose.msra.mxu0 0.0
    %175 = vmatprep.subr.mxu0 0.0
    %176 = vmatpush1.xpose.msra.mxu0 0.0
    %177 = vmatprep.subr.mxu0 0.0
    %178 = vmatpush1.xpose.msra.mxu0 0.0
    %179 = vmatprep.subr.mxu0 0.0
    %180 = vmatpush1.xpose.msra.mxu0 0.0
    %181 = vmatprep.subr.mxu0 0.0
    %182 = vmatpush1.xpose.msra.mxu0 0.0
    %183 = vmatprep.subr.mxu0 0.0
    %184 = vmatpush1.xpose.msra.mxu0 0.0
    %185 = vmatprep.subr.mxu0 0.0
    %186 = vmatpush1.xpose.msra.mxu0 0.0
    %187 = vmatprep.subr.mxu0 0.0
    %188 = vmatpush1.xpose.msra.mxu0 0.0
    %189 = vmatprep.subr.mxu0 0.0
    %190 = vmatpush1.xpose.msra.mxu0 0.0
    %191 = vmatprep.subr.mxu0 0.0
    %192 = vmatpush1.xpose.msra.mxu0 0.0
    %193 = vmatprep.subr.mxu0 0.0
    %194 = vmatpush1.xpose.msra.mxu0 0.0
    %195 = vmatprep.subr.mxu0 0.0
    %196 = vmatpush1.xpose.msra.mxu0 0.0
    %197 = vmatprep.subr.mxu0 0.0
    %198 = vmatpush1.xpose.msra.mxu0 0.0
    %199 = vmatprep.subr.mxu0 0.0
    %200 = vmatpush1.xpose.msra.mxu0 0.0
    %201 = vmatprep.subr.mxu0 0.0
    %202 = vmatpush1.xpose.msra.mxu0 0.0
    %203 = vmatprep.subr.mxu0 0.0
    %204 = vmatpush1.xpose.msra.mxu0 0.0
    %205 = vmatprep.subr.mxu0 0.0
    %206 = vmatpush1.xpose.msra.mxu0 0.0
    %207 = vmatprep.mubr.f32.mxu0 0.0
    %208 = vmatmul.mubr.f32.gmra.mrb[0].mxu0 %v135
    %v209 = vpop.f32.mrb[0].mxu0
    %v210 = vadd.f32 0.0, %v209
    %v211 = vpop.f32.mrb[0].mxu0
    %212 = vmatprep.mubr.f32.mxu0 0.0
    %213 = vmatmul.mubr.f32.gmra.mrb[0].mxu0 %v137
    %v214 = vpop.f32.mrb[0].mxu0
    %v215 = vadd.f32 0.0, %v214
    %v216 = vpop.f32.mrb[0].mxu0
    %217 = vdwg.mxu0
    %v218 = vlaneseq
    %v219 = vshrl.u32 %v218, 7
    %v220 = vadd.s32 %v219, 8
    %v221 = vlaneseq
    %v222 = vand.u32 %v221, 127
    %vm223 = vcmp.ge.s32.totalorder %v219, 8
    %vm224 = vcmp.ge.s32.totalorder %v220, 8
    %v225 = vsel %vm223, 1, 0
    %v226 = vsel %vm224, 1, 0
    %v227 = vmul.u32 %v225, 8
    %v228 = vmul.u32 %v226, 8
    %vm229 = vcmp.ge.s32.totalorder %v222, %v227
    %vm230 = vcmp.ge.s32.totalorder %v222, %v228
    %vm231 = vcmp.le.s32.totalorder %v222, %v219
    %vm232 = vcmp.le.s32.totalorder %v222, %v220
    %vm233 = vmand %vm229, %vm231
    %vm234 = vmand %vm230, %vm232
    %v235 = vsel %vm233, %v210, -1e+30
    %v236 = vsel %vm234, %v215, -1e+30
    %v237 = vsel %vm134, %v235, -inf
    %238 = vmax.xlane.f32.xlu0 %v237
    %v239 = vpop.xlane.xlu0 %238
    %v240 = vsel %vm134, %v236, -inf
    %241 = vmax.xlane.f32.xlu0 %v240
    %v242 = vpop.xlane.xlu0 %241
    %v243 = vsub.f32 %v235, %v239
    %v244 = vsub.f32 %v236, %v242
    %v245 = vmul.f32 %v243, 1.442695
    %v246 = vpow.pop %v245
    %v247 = vmul.f32 %v244, 1.442695
    %v248 = vpow.pop %v247
    %v249 = vsel %vm134, %v246, 0.0
    %250 = vadd.xlane.f32.xlu0 %v249
    %v251 = vpop.xlane.xlu0 %250
    %v252 = vsel %vm134, %v248, 0.0
    %253 = vadd.xlane.f32.xlu0 %v252
    %v254 = vpop.xlane.xlu0 %253
    %v255 = vrcp.pop %v251
    %v256 = vrcp.pop %v254
    %v257 = vmul.f32 %v246, %v255
    %v258 = vmul.f32 %v248, %v256
    %259 = vrot.lane.b32.xlu0 %v120, 96
    %v260 = vpop.permute.xlu0 %259
    %261 = vrot.lane.b32.xlu0 %v125, 96
    %v262 = vpop.permute.xlu0 %261
    %v266 = vsel %vm134, %v257, 0
    %v269 = vsel %vm134, %v258, 0
    %271 = vmatprep.subr.mxu0 0.0
    %272 = vmatpush1.msra.mxu0 %v260
    %273 = vmatprep.subr.mxu0 0.0
    %274 = vmatpush1.msra.mxu0 %v262
    %275 = vmatprep.subr.mxu0 0.0
    %276 = vmatpush1.msra.mxu0 0.0
    %277 = vmatprep.subr.mxu0 0.0
    %278 = vmatpush1.msra.mxu0 0.0
    %279 = vmatprep.subr.mxu0 0.0
    %280 = vmatpush1.msra.mxu0 0.0
    %281 = vmatprep.subr.mxu0 0.0
    %282 = vmatpush1.msra.mxu0 0.0
    %283 = vmatprep.subr.mxu0 0.0
    %284 = vmatpush1.msra.mxu0 0.0
    %285 = vmatprep.subr.mxu0 0.0
    %286 = vmatpush1.msra.mxu0 0.0
    %287 = vmatprep.subr.mxu0 0.0
    %288 = vmatpush1.msra.mxu0 0.0
    %289 = vmatprep.subr.mxu0 0.0
    %290 = vmatpush1.msra.mxu0 0.0
    %291 = vmatprep.subr.mxu0 0.0
    %292 = vmatpush1.msra.mxu0 0.0
    %293 = vmatprep.subr.mxu0 0.0
    %294 = vmatpush1.msra.mxu0 0.0
    %295 = vmatprep.subr.mxu0 0.0
    %296 = vmatpush1.msra.mxu0 0.0
    %297 = vmatprep.subr.mxu0 0.0
    %298 = vmatpush1.msra.mxu0 0.0
    %299 = vmatprep.subr.mxu0 0.0
    %300 = vmatpush1.msra.mxu0 0.0
    %301 = vmatprep.subr.mxu0 0.0
    %302 = vmatpush1.msra.mxu0 0.0
    %303 = vmatprep.subr.mxu0 0.0
    %304 = vmatpush1.msra.mxu0 0.0
    %305 = vmatprep.subr.mxu0 0.0
    %306 = vmatpush1.msra.mxu0 0.0
    %307 = vmatprep.subr.mxu0 0.0
    %308 = vmatpush1.msra.mxu0 0.0
    %309 = vmatprep.subr.mxu0 0.0
    %310 = vmatpush1.msra.mxu0 0.0
    %311 = vmatprep.subr.mxu0 0.0
    %312 = vmatpush1.msra.mxu0 0.0
    %313 = vmatprep.subr.mxu0 0.0
    %314 = vmatpush1.msra.mxu0 0.0
    %315 = vmatprep.subr.mxu0 0.0
    %316 = vmatpush1.msra.mxu0 0.0
    %317 = vmatprep.subr.mxu0 0.0
    %318 = vmatpush1.msra.mxu0 0.0
    %319 = vmatprep.subr.mxu0 0.0
    %320 = vmatpush1.msra.mxu0 0.0
    %321 = vmatprep.subr.mxu0 0.0
    %322 = vmatpush1.msra.mxu0 0.0
    %323 = vmatprep.subr.mxu0 0.0
    %324 = vmatpush1.msra.mxu0 0.0
    %325 = vmatprep.subr.mxu0 0.0
    %326 = vmatpush1.msra.mxu0 0.0
    %327 = vmatprep.subr.mxu0 0.0
    %328 = vmatpush1.msra.mxu0 0.0
    %329 = vmatprep.subr.mxu0 0.0
    %330 = vmatpush1.msra.mxu0 0.0
    %331 = vmatprep.subr.mxu0 0.0
    %332 = vmatpush1.msra.mxu0 0.0
    %333 = vmatprep.subr.mxu0 0.0
    %334 = vmatpush1.msra.mxu0 0.0
    %335 = vmatprep.mubr.f32.mxu0 0.0
    %336 = vmatmul.mubr.f32.gmra.mrb[0].mxu0 %v266
    %v337 = vpop.f32.mrb[0].mxu0
    %v338 = vadd.f32 0.0, %v337
    %v339 = vpop.f32.mrb[0].mxu0
    %340 = vmatprep.mubr.f32.mxu0 0.0
    %341 = vmatmul.mubr.f32.gmra.mrb[0].mxu0 %v269
    %v342 = vpop.f32.mrb[0].mxu0
    %v343 = vadd.f32 0.0, %v342
    %v344 = vpop.f32.mrb[0].mxu0
    %345 = vdwg.mxu0
    %346 = vst.msk [vmem:[#allocation7] sm:$0xff] %vm134, %v338
    %347 = vst.msk [vmem:[#allocation7 + $0x8] sm:$0xff] %vm134, %v343
    // Predicated region
    $region18: #{head_forward.1} parent=1 // pred_check
      _
    $region19: #{head_forward.1} parent=1 // pred_check_branch
      %349 = sbr.rel (0) target = $region21
    $region20: #{head_forward.1} parent=1 // pred_region
      %s351 = ssub.s32 256, 256
      %352 = vsyncadd [#allocation4], %s351
      %s353 = sshll.u32 [#allocation7], 4
      %s354 = int_to_ptr.vmem [resolvable:$true] %s353
      %359 = dma.vmem_to_hbm [thread:$0]  %s354, 256, %s2, [#allocation4], 128, 128, 8
    $region21: #{head_forward.1} parent=1 // pred_fallthru
      _
    // Predicated region
    $region22: #{head_forward.1} parent=1 // pred_check
      _
    $region23: #{head_forward.1} parent=1 // pred_check_branch
      %361 = sbr.rel (0) target = $region25
    $region24: #{head_forward.1} parent=1 // pred_region
      %362 = dma.done [#allocation4], 256
    $region25: #{head_forward.1} parent=1 // pred_fallthru
      _
    %363 = vsyncpa [#allocation3], 1
    %364 = vsyncpa [#allocation6], 1
    %365 = vsyncpa [#allocation4], 1

</llo_original>
